<compile_context>
chip_gen: v6e
topology: v6e:2x2x1
jax: 0.10.0
libtpu: 0.0.40
codegen_flags: <defaults>
</compile_context>

<pallas_src>
import functools

import jax
import jax.numpy as jnp
from jax.experimental import pallas as pl
from jax.experimental.pallas import tpu as pltpu


_LANE = 128


def _round_up(n, m):
    return ((n + m - 1) // m) * m


def _actnorm_kernel(x_ref, y_ref, log_scale_ref, *, eps):
    """One channel tile: data-dependent init + affine transform + log_scale.

    Channels are independent, so per-tile statistics over the full batch axis
    are exact -- no cross-tile reduction is required.
    """
    x = x_ref[...].astype(jnp.float32)                             # (B, TC)

    # Per-channel statistics over the batch axis
    # (== transpose(0,1).view(C,-1).mean(1) in the reference).
    mean = jnp.mean(x, axis=0, keepdims=True)                      # (1, TC)
    zero_mean = x - mean
    var = jnp.mean(zero_mean * zero_mean, axis=0, keepdims=True)   # (1, TC)

    # scale == exp(log_scale) == 1/sqrt(var + eps): one rsqrt replaces the
    # reference's sqrt + divide + two exp calls (all EUP-slot ops).
    scale = jax.lax.rsqrt(var + eps)                               # (1, TC)
    shift = -mean * scale                                          # (1, TC)

    # Affine transform (elementwise hot path, stays in VMEM/vregs).
    y_ref[...] = (x * scale + shift).astype(y_ref.dtype)

    # Per-channel log_scale; the wrapper sums the real channels for logdet.
    log_scale_ref[...] = jnp.log(scale)


def actnorm_forward(x, eps=1e-5, max_channel_tile=512):
    """Runs the first-call ActNorm forward on x of shape [B, C].

    Returns (y, logdet).
    """
    B, C = x.shape

    # Lane-dense channel tiling: tile width is a multiple of 128 (>= 512 when
    # the channel count allows it); channels are zero-padded so tiles divide
    # evenly. Padded channels compute harmless finite values and are sliced
    # off (and excluded from logdet) below.
    tc = min(max_channel_tile, _round_up(C, _LANE))
    c_pad = _round_up(C, tc)
    x_p = jnp.pad(x, ((0, 0), (0, c_pad - C))) if c_pad != C else x
    num_tiles = c_pad // tc

    # Rough per-step VMEM budget: double-buffered input + output tiles plus
    # f32 temporaries. Raise the scoped limit only when the default would be
    # tight; cap at 64 MiB so the setting is valid on v7x as well.
    itemsize = jnp.dtype(x.dtype).itemsize
    est = 4 * B * tc * itemsize + 4 * B * tc * 4
    vmem_limit = None
    if est > 24 * 1024 * 1024:
        vmem_limit = min(64 * 1024 * 1024, 2 * est)

    y_p, log_scale = pl.pallas_call(
        functools.partial(_actnorm_kernel, eps=eps),
        out_shape=(
            jax.ShapeDtypeStruct((B, c_pad), x.dtype),
            jax.ShapeDtypeStruct((1, c_pad), jnp.float32),
        ),
        grid=(num_tiles,),
        in_specs=[pl.BlockSpec((B, tc), lambda c: (0, c))],
        out_specs=(
            pl.BlockSpec((B, tc), lambda c: (0, c)),
            pl.BlockSpec((1, tc), lambda c: (0, c)),
        ),
        compiler_params=pltpu.CompilerParams(
            dimension_semantics=("parallel",),
            vmem_limit_bytes=vmem_limit,
        ),
    )(x_p)

    y = y_p[:, :C] if c_pad != C else y_p
    logdet = jnp.sum(log_scale[0, :C])
    return y, logdet


def _reference(x, eps=1e-5):
    """Pure-JAX reference mirroring the PyTorch forward (first call)."""
    x32 = x.astype(jnp.float32)
    mean = jnp.mean(x32, axis=0)
    var = jnp.mean((x32 - mean[None, :]) ** 2, axis=0)
    std = jnp.sqrt(var + eps)
    log_scale = jnp.log(1.0 / std)
    shift = -mean * jnp.exp(log_scale)
    y = x32 * jnp.exp(log_scale)[None, :] + shift[None, :]
    return y.astype(x.dtype), jnp.sum(log_scale)


if __name__ == "__main__":
    key = jax.random.PRNGKey(0)

    def make_input(k, B, C):
        k1, k2, k3 = jax.random.split(k, 3)
        base = jax.random.normal(k1, (B, C), dtype=jnp.float32)
        ch_scale = 0.5 + jax.random.uniform(k2, (1, C), dtype=jnp.float32)
        ch_shift = jax.random.normal(k3, (1, C), dtype=jnp.float32)
        return base * ch_scale + ch_shift

    k_a, k_b = jax.random.split(key)

    # Small case matching the module spec (C=32 -> padded to one 128-lane tile).
    x_small = make_input(k_a, 8, 32)
    y, logdet = actnorm_forward(x_small)
    jax.block_until_ready((y, logdet))
    y_ref, logdet_ref = _reference(x_small)
    assert jnp.allclose(y, y_ref, atol=1e-5, rtol=1e-5), "output mismatch (small)"
    assert jnp.allclose(logdet, logdet_ref, atol=1e-4, rtol=1e-4), "logdet mismatch (small)"

    # Multi-tile case exercising the pipelined channel grid (2 tiles of 512).
    x_big = make_input(k_b, 16, 1024)
    y2, logdet2 = actnorm_forward(x_big)
    jax.block_until_ready((y2, logdet2))
    y2_ref, logdet2_ref = _reference(x_big)
    assert jnp.allclose(y2, y2_ref, atol=1e-5, rtol=1e-5), "output mismatch (big)"
    assert jnp.allclose(logdet2, logdet2_ref, atol=1e-4, rtol=1e-4), "logdet mismatch (big)"

    print("KERNEL_OK")
</pallas_src>

<mosaic_0001>
module attributes {stable_mosaic.version = 11 : i64} {
  func.func @_actnorm_kernel(%arg0: i32, %arg1: memref<8x128xf32, #tpu.memory_space<vmem>>, %arg2: memref<8x128xf32, #tpu.memory_space<vmem>>, %arg3: memref<1x128xf32, #tpu.memory_space<vmem>>) attributes {dimension_semantics = [#tpu.dimension_semantics<parallel>], iteration_bounds = array<i64: 1>, scalar_prefetch = 0 : i64, scratch_operands = 0 : i64, tpu.core_type = #tpu.core_type<tc>, window_params = [{transform_indices = @transform_0, window_bounds = array<i64: 8, 128>}, {transform_indices = @transform_1, window_bounds = array<i64: 8, 128>}, {transform_indices = @transform_2, window_bounds = array<i64: 1, 128>}]} {
    %c0 = arith.constant 0 : index
    %c0_0 = arith.constant 0 : index
    %0 = vector.load %arg1[%c0, %c0_0] : memref<8x128xf32, #tpu.memory_space<vmem>>, vector<8x128xf32>
    %cst = arith.constant dense<0.000000e+00> : vector<128xf32>
    %1 = vector.multi_reduction <add>, %0, %cst [0] : vector<8x128xf32> to vector<128xf32>
    %2 = vector.shape_cast %1 : vector<128xf32> to vector<1x128xf32>
    %cst_1 = arith.constant 8.000000e+00 : f32
    %3 = vector.broadcast %cst_1 : f32 to vector<1x128xf32>
    %4 = arith.divf %2, %3 : vector<1x128xf32>
    %5 = vector.broadcast %4 : vector<1x128xf32> to vector<8x128xf32>
    %6 = arith.subf %0, %5 : vector<8x128xf32>
    %7 = arith.mulf %6, %6 : vector<8x128xf32>
    %cst_2 = arith.constant dense<0.000000e+00> : vector<128xf32>
    %8 = vector.multi_reduction <add>, %7, %cst_2 [0] : vector<8x128xf32> to vector<128xf32>
    %9 = vector.shape_cast %8 : vector<128xf32> to vector<1x128xf32>
    %cst_3 = arith.constant 8.000000e+00 : f32
    %10 = vector.broadcast %cst_3 : f32 to vector<1x128xf32>
    %11 = arith.divf %9, %10 : vector<1x128xf32>
    %cst_4 = arith.constant 9.99999974E-6 : f32
    %12 = vector.broadcast %cst_4 : f32 to vector<1x128xf32>
    %13 = arith.addf %11, %12 : vector<1x128xf32>
    %14 = math.rsqrt %13 : vector<1x128xf32>
    %cst_5 = arith.constant 0.000000e+00 : f32
    %15 = vector.broadcast %cst_5 : f32 to vector<1x128xf32>
    %16 = arith.subf %15, %4 : vector<1x128xf32>
    %17 = arith.mulf %16, %14 : vector<1x128xf32>
    %18 = vector.broadcast %14 : vector<1x128xf32> to vector<8x128xf32>
    %19 = arith.mulf %0, %18 : vector<8x128xf32>
    %20 = vector.broadcast %17 : vector<1x128xf32> to vector<8x128xf32>
    %21 = arith.addf %19, %20 : vector<8x128xf32>
    %c0_6 = arith.constant 0 : index
    %c0_7 = arith.constant 0 : index
    %22 = vector.load %arg2[%c0_6, %c0_7] : memref<8x128xf32, #tpu.memory_space<vmem>>, vector<8x128xf32>
    tpu.vector_store %arg2[%c0_6, %c0_7], %21 {strides = array<i32>} : memref<8x128xf32, #tpu.memory_space<vmem>>, vector<8x128xf32>,
    %23 = math.log %14 : vector<1x128xf32>
    %c0_8 = arith.constant 0 : index
    %c0_9 = arith.constant 0 : index
    %24 = vector.load %arg3[%c0_8, %c0_9] : memref<1x128xf32, #tpu.memory_space<vmem>>, vector<1x128xf32>
    tpu.vector_store %arg3[%c0_8, %c0_9], %23 {strides = array<i32>} : memref<1x128xf32, #tpu.memory_space<vmem>>, vector<1x128xf32>,
    return
  }
  func.func @transform_0(%arg0: i32) -> (i32, i32) {
    %c0_i32 = arith.constant 0 : i32
    %c0_i32_0 = arith.constant 0 : i32
    return %c0_i32, %arg0 : i32, i32
  }
  func.func @transform_1(%arg0: i32) -> (i32, i32) {
    %c0_i32 = arith.constant 0 : i32
    %c0_i32_0 = arith.constant 0 : i32
    return %c0_i32, %arg0 : i32, i32
  }
  func.func @transform_2(%arg0: i32) -> (i32, i32) {
    %c0_i32 = arith.constant 0 : i32
    %c0_i32_0 = arith.constant 0 : i32
    return %c0_i32, %arg0 : i32, i32
  }
}

</mosaic_0001>

<llo_original>
// kernel: tpu_custom_call.1
$region0: #{tpu_custom_call.1}
  #allocation0 [shape = 'u32[]', space=smem, size = 0x4, offset = 0x4, fixed_abs, tag = 'smem constant byte address 0x4 - core index']
  #allocation1 [shape = 'u32[144,128]{1,0:T(1,128)}', space=vmem, size = 0x12000, scoped, tag = 'internal scratch']
  %s0 = inlined_call_operand.hbm [shape: f32[8,128], index: 0, kind: input, shape index: {}]
  %s1 = inlined_call_operand.hbm [shape: f32[8,128], index: 1, kind: output, shape index: {0}]
  %s2 = inlined_call_operand.hbm [shape: f32[1,128], index: 2, kind: output, shape index: {1}]
  %3 = xla_tuple %s1, %s2
  %s4 = sld [smem:[#allocation0]]
  $region26: #{tpu_custom_call.1} parent=0
    _
  %s6 = ssub.s32 1, %s4
  %s7 = scalar_select 0, %s6, %s4
  $region1: #{tpu_custom_call.1} parent=0
    #allocation2 [shape = 'u8[4096]{0}', space=vmem, size = 0x1000, scoped, tag = 'input window, operand 0, single buffered']
    #allocation3 [shape = 's32[1]{0}', space=sflag, size = 0x4, scoped, tag = 'scoped memory for tpu_custom_call.1']
    #allocation4 [shape = 's32[1]{0}', space=sflag, size = 0x4, scoped, tag = 'scoped memory for tpu_custom_call.1']
    #allocation5 [shape = 'u8[4096]{0}', space=vmem, size = 0x1000, scoped, tag = 'output window, operand 0, single buffered']
    #allocation6 [shape = 'u8[512]{0}', space=vmem, size = 0x400, scoped, tag = 'output window, operand 1, single buffered']
    #allocation7 [shape = 's32[1]{0}', space=sflag, size = 0x4, scoped, tag = 'scoped memory for tpu_custom_call.1']
    %8 = vsyncpa [#allocation3], 0
    %9 = vsyncpa [#allocation4], 0
    %10 = vsyncpa [#allocation7], 0
    // Predicated region
    $region2: #{tpu_custom_call.1} parent=1 // pred_check
      _
    $region3: #{tpu_custom_call.1} parent=1 // pred_check_branch
      %12 = sbr.rel (0) target = $region5
    $region4: #{tpu_custom_call.1} parent=1 // pred_region
      %s14 = ssub.s32 128, 128
      %15 = vsyncadd [#allocation3], %s14
      %s17 = sshll.u32 [#allocation2], 4
      %s18 = int_to_ptr.vmem [resolvable:$true] %s17
      %20 = dma.hbm_to_vmem [thread:$0]  %s0, 128, %s18, [#allocation3]
    $region5: #{tpu_custom_call.1} parent=1 // pred_fallthru
      _
    // Predicated region
    $region6: #{tpu_custom_call.1} parent=1 // pred_check
      _
    $region7: #{tpu_custom_call.1} parent=1 // pred_check_branch
      %22 = sbr.rel (0) target = $region9
    $region8: #{tpu_custom_call.1} parent=1 // pred_region
      %23 = dma.done [#allocation3], 128
    $region9: #{tpu_custom_call.1} parent=1 // pred_fallthru
      _
    %v24 = vld [vmem:[#allocation2] sm:$0xff]
    %v25 = vrot.slane %v24, 4
    %v26 = vadd.f32 %v24, %v25
    %v27 = vrot.slane %v26, 2
    %v28 = vadd.f32 %v26, %v27
    %v29 = vrot.slane %v28, 1
    %v30 = vadd.f32 %v28, %v29
    %v31 = vrcp.pop 8.0
    %v32 = vmul.f32 %v30, %v31
    %v33 = vsub.f32 %v24, %v32
    %v34 = vmul.f32 %v33, %v33
    %v35 = vrot.slane %v34, 4
    %v36 = vadd.f32 %v34, %v35
    %v37 = vrot.slane %v36, 2
    %v38 = vadd.f32 %v36, %v37
    %v39 = vrot.slane %v38, 1
    %v40 = vadd.f32 %v38, %v39
    %v41 = vmul.f32 %v40, %v31
    %v42 = vadd.f32 %v41, 1e-05
    %v43 = vrsqrt.pop %v42
    %v44 = vsub.f32 0.0, %v32
    %v45 = vmul.f32 %v44, %v43
    %v46 = vmul.f32 %v24, %v43
    %v47 = vadd.f32 %v46, %v45
    %48 = vst [vmem:[#allocation5] sm:$0xff] %v47
    %v49 = vlog2.pop %v43
    %v50 = vmul.f32 %v49, 0.6931472
    %51 = vst [vmem:[#allocation6] sm:$0x1] %v50
    // Predicated region
    $region10: #{tpu_custom_call.1} parent=1 // pred_check
      _
    $region11: #{tpu_custom_call.1} parent=1 // pred_check_branch
      %53 = sbr.rel (0) target = $region13
    $region12: #{tpu_custom_call.1} parent=1 // pred_region
      %s55 = ssub.s32 128, 128
      %56 = vsyncadd [#allocation4], %s55
      %s58 = sshll.u32 [#allocation5], 4
      %s59 = int_to_ptr.vmem [resolvable:$true] %s58
      %61 = dma.vmem_to_hbm [thread:$0]  %s59, 128, %s1, [#allocation4]
    $region13: #{tpu_custom_call.1} parent=1 // pred_fallthru
      _
    // Predicated region
    $region14: #{tpu_custom_call.1} parent=1 // pred_check
      _
    $region15: #{tpu_custom_call.1} parent=1 // pred_check_branch
      %63 = sbr.rel (0) target = $region17
    $region16: #{tpu_custom_call.1} parent=1 // pred_region
      %s65 = ssub.s32 16, 16
      %66 = vsyncadd [#allocation7], %s65
      %s68 = sshll.u32 [#allocation6], 4
      %s69 = int_to_ptr.vmem [resolvable:$true] %s68
      %71 = dma.vmem_to_hbm [thread:$0]  %s69, 16, %s2, [#allocation7]
    $region17: #{tpu_custom_call.1} parent=1 // pred_fallthru
      _
    // Predicated region
    $region18: #{tpu_custom_call.1} parent=1 // pred_check
      _
    $region19: #{tpu_custom_call.1} parent=1 // pred_check_branch
      %73 = sbr.rel (0) target = $region21
    $region20: #{tpu_custom_call.1} parent=1 // pred_region
      %74 = dma.done [#allocation4], 128
    $region21: #{tpu_custom_call.1} parent=1 // pred_fallthru
      _
    // Predicated region
    $region22: #{tpu_custom_call.1} parent=1 // pred_check
      _
    $region23: #{tpu_custom_call.1} parent=1 // pred_check_branch
      %76 = sbr.rel (0) target = $region25
    $region24: #{tpu_custom_call.1} parent=1 // pred_region
      %77 = dma.done [#allocation7], 16
    $region25: #{tpu_custom_call.1} parent=1 // pred_fallthru
      _
    %78 = vsyncpa [#allocation3], 1
    %79 = vsyncpa [#allocation4], 1
    %80 = vsyncpa [#allocation7], 1

</llo_original>
